<compile_context>
chip_gen: v5e
topology: v5e:2x2
jax: 0.10.0
libtpu: 0.0.40
codegen_flags: <defaults>
</compile_context>

<pallas_src>
import inspect
import math

import jax
import jax.numpy as jnp
from jax import lax
from jax.experimental import pallas as pl
from jax.experimental.pallas import tpu as pltpu


def _round_up(v, m):
    return (v + m - 1) // m * m


def _patch_merge_kernel(x_ref, w_ref, b_ref, o_ref):
    """Fused LayerNorm(4C) + Linear(4C -> N) on one tile of merged patches.

    x_ref : (t_r, 2*out_w, 2C)  one output image-row of tokens per leading
            index; dim 1 is [kh=0 tokens | kh=1 tokens], each token's 2C
            features are contiguous in (kw, c) order.
    w_ref : (2, 2C, n_pad)      LN-gamma-scaled, (kh,kw,c)-permuted weight in
                                the MXU dtype (bf16 for f32/bf16 inputs).
    b_ref : (1, n_pad)          beta @ W   (f32).
    o_ref : (t_r*out_w, n_pad)  lane-dense 2-D output tile.
    """
    t_r, two_ow, c2 = x_ref.shape
    out_w = two_ow // 2
    rows = t_r * out_w
    d = 2.0 * c2                        # real LayerNorm feature count (= 4*C)

    # kh = 0 / kh = 1 halves: static slices of the same contiguous tile.
    xt = x_ref[:, :out_w, :].reshape(rows, c2).astype(jnp.float32)
    xb = x_ref[:, out_w:, :].reshape(rows, c2).astype(jnp.float32)

    # Single-pass mean / variance over the 4C features.
    # TODO(synk): switch to a two-pass/Welford variant if activations ever carry
    # a large DC offset (the max() clamp below only guards the sign).
    s1 = jnp.sum(xt, axis=-1, keepdims=True) + jnp.sum(xb, axis=-1, keepdims=True)
    s2 = (jnp.sum(xt * xt, axis=-1, keepdims=True)
          + jnp.sum(xb * xb, axis=-1, keepdims=True))
    mean = s1 * (1.0 / d)
    var = jnp.maximum(s2 * (1.0 / d) - mean * mean, 0.0)
    inv = lax.rsqrt(var + 1e-5)         # eps matches torch LayerNorm default

    mm_dtype = w_ref.dtype              # bf16 MXU path, f32 accumulation
    yt = ((xt - mean) * inv).astype(mm_dtype)
    yb = ((xb - mean) * inv).astype(mm_dtype)

    acc = jnp.dot(yt, w_ref[0], preferred_element_type=jnp.float32)
    acc = acc + jnp.dot(yb, w_ref[1], preferred_element_type=jnp.float32)
    acc = acc + b_ref[...]
    o_ref[...] = acc.astype(o_ref.dtype)


def _vmem_budget():
    """Generation-aware VMEM budget (bytes) and scoped vmem limit."""
    try:
        info = pltpu.get_tpu_info()
        vmem_cap = int(getattr(info, "vmem_capacity_bytes", 0)) or (64 << 20)
    except Exception:
        vmem_cap = 64 << 20                     # conservative fallback
    headroom = max(16 << 20, vmem_cap // 4)     # Mosaic internals / spill slack
    limit_cap = max(vmem_cap - headroom, vmem_cap // 2)   # 96 MiB / 48 MiB
    budget = int(limit_cap * 0.85)
    max_rows = 2048 if vmem_cap > (64 << 20) else 1024
    return budget, limit_cap, max_rows


def _choose_row_tile(BH, out_w, c2, n_pad, in_item, mm_item, out_item):
    """Pick t_r (output image-rows per grid step) and the scoped VMEM limit."""
    budget, limit_cap, max_rows = _vmem_budget()

    # Per output image-row (= out_w tokens): double-buffered input block,
    # double-buffered output block, f32/bf16 temporaries.
    per_row = (2 * out_w * c2 * in_item) * 2 \
        + (out_w * n_pad * out_item) * 2 \
        + out_w * (c2 * (8 + 2 * mm_item) + n_pad * 4)
    w_bytes = 2 * c2 * n_pad * mm_item * 2 + 2 * n_pad * 4 * 2   # worst case

    avail = max(budget - w_bytes, per_row)
    t_r = int(min(avail // per_row, max(1, max_rows // max(out_w, 1))))
    t_r = max(t_r, 1)

    # >= 4 grid steps where possible: 2 per TensorCore on v7x megacore and
    # enough steps for the DMA pipeline to overlap prologue/epilogue.
    if BH >= 4:
        t_r = min(t_r, max(1, BH // 4))
    t_r = min(t_r, BH)

    # Keep the 2-D output block sublane-aligned ((t_r*out_w) % 8 == 0) unless
    # the block already spans the whole array.
    if t_r < BH:
        m = 8 // math.gcd(out_w, 8)
        t_r = max(m, (t_r // m) * m)
        if t_r >= BH:
            t_r = BH

    return t_r, int(limit_cap)


def _pipeline_mode_supported():
    try:
        return hasattr(pl, "Buffered") and \
            "pipeline_mode" in inspect.signature(pl.BlockSpec).parameters
    except (TypeError, ValueError):
        return hasattr(pl, "Buffered")


def _build_call(BH, out_w, c2, n_pad, t_r, out_dtype, vmem_limit, single_buffer):
    rows_total = BH * out_w

    def const_spec(shape):
        idx = lambda i, _z=(0,) * len(shape): _z
        if single_buffer:
            return pl.BlockSpec(shape, idx, pipeline_mode=pl.Buffered(1))
        return pl.BlockSpec(shape, idx)

    in_specs = [
        # single contiguous block per step: both kh rows of t_r output rows
        pl.BlockSpec((t_r, 2 * out_w, c2), lambda i: (i, 0, 0)),
        const_spec((2, c2, n_pad)),      # grid-invariant weight
        const_spec((1, n_pad)),          # grid-invariant bias
    ]
    out_spec = pl.BlockSpec((t_r * out_w, n_pad), lambda i: (i, 0))

    return pl.pallas_call(
        _patch_merge_kernel,
        out_shape=jax.ShapeDtypeStruct((rows_total, n_pad), out_dtype),
        grid_spec=pltpu.PrefetchScalarGridSpec(
            num_scalar_prefetch=0,
            grid=(pl.cdiv(BH, t_r),),
            in_specs=in_specs,
            out_specs=out_spec,
        ),
        compiler_params=pltpu.CompilerParams(
            dimension_semantics=("parallel",),
            vmem_limit_bytes=vmem_limit,
        ),
    )


def patch_merging_forward(x, input_size, gamma, beta, weight,
                          kernel_size=2, stride=2):
    """Replicates PatchMerging.forward.

    x      : (B, L, C) with L == H * W.
    gamma, beta : (4*C,) LayerNorm affine params (nn.Unfold feature order).
    weight : (4*C, out_channels) bias-free reduction weight (rows in the
             nn.Unfold order c*4 + kh*2 + kw).
    Returns (y, (out_h, out_w)) with y : (B, out_h*out_w, out_channels).
    """
    # TODO(synk): only the Swin config kernel_size == stride == 2, dilation == 1,
    # padding='corner' is implemented (the module's only use in practice).
    assert kernel_size == 2 and stride == 2

    B, L, C = x.shape
    H, W = input_size
    assert L == H * W, "input feature has wrong size"
    N = weight.shape[1]

    xhw = x.reshape(B, H, W, C)
    # AdaptivePadding 'corner': pad bottom/right so H, W divisible by stride.
    pad_h = (-H) % 2
    pad_w = (-W) % 2
    if pad_h or pad_w:
        # TODO(synk): rare path; could be folded into the kernel DMA (index_map
        # clamp + in-kernel masking) instead of a padded HBM copy.
        xhw = jnp.pad(xhw, ((0, 0), (0, pad_h), (0, pad_w), (0, 0)))
    out_h = (H + pad_h) // 2
    out_w = (W + pad_w) // 2
    BH = B * out_h
    c2 = 2 * C

    # Copy-free view: one output image-row of tokens per leading index; dim 1
    # is [kh=0 tokens | kh=1 tokens], each token's (kw, c) features contiguous.
    x3 = xhw.reshape(BH, 2 * out_w, c2)

    # One-time host-side parameter prep: fold LN affine into the linear,
    # permute rows from unfold order (c,kh,kw) -> (kh,kw,c), pad N to a lane
    # multiple when cheap, pre-cast once to the MXU dtype.
    w_f32 = weight.astype(jnp.float32)
    w_eff = w_f32 * gamma.astype(jnp.float32)[:, None]
    bias_eff = beta.astype(jnp.float32) @ w_f32                       # (N,)
    w_perm = w_eff.reshape(C, 2, 2, N).transpose(1, 2, 0, 3).reshape(2, c2, N)

    n_pad = N if (N % 128 == 0 or N < 64) else _round_up(N, 128)
    if n_pad != N:
        w_perm = jnp.pad(w_perm, ((0, 0), (0, 0), (0, n_pad - N)))
        bias_eff = jnp.pad(bias_eff, ((0, n_pad - N),))

    # bf16 on the MXU (f32 accumulation) for f32/bf16 inputs: ~3-4x MXU rate
    # and half the weight DMA / VMEM on v6e/v7x. Other dtypes pass through.
    if x.dtype == jnp.float32 or x.dtype == jnp.bfloat16:
        mm_dtype = jnp.bfloat16
    else:
        mm_dtype = x.dtype
    w_perm = w_perm.astype(mm_dtype)
    bias2 = bias_eff.reshape(1, n_pad)            # bias stays f32

    t_r, vmem_limit = _choose_row_tile(
        BH, out_w, c2, n_pad,
        jnp.dtype(x.dtype).itemsize,
        jnp.dtype(mm_dtype).itemsize,
        jnp.dtype(x.dtype).itemsize)

    def build(single_buffer):
        return _build_call(BH, out_w, c2, n_pad, t_r, x.dtype, vmem_limit,
                           single_buffer)

    out = None
    if _pipeline_mode_supported():
        try:
            out = build(True)(x3, w_perm, bias2)
        except (TypeError, ValueError, NotImplementedError,
                pltpu.LoweringException):
            # pipeline_mode=Buffered(1) rejected by this jax build for a
            # grid-invariant operand. The retry below uses default (double)
            # buffering -- strictly MORE VMEM and the identical kernel -- so a
            # genuine failure (OOM, shape bug) re-raises from the plain build.
            out = None
    if out is None:
        out = build(False)(x3, w_perm, bias2)

    if n_pad != N:
        out = out[:, :N]
    return out.reshape(B, out_h * out_w, N), (out_h, out_w)


if __name__ == "__main__":
    key = jax.random.PRNGKey(0)
    k1, k2, k3, k4, k5 = jax.random.split(key, 5)

    B, C, H, W = 2, 4, 16, 16                  # in_channels = 4
    out_channels = 8
    D = 4 * C                                  # sample_dim = 16

    # Non-trivial LN affine so the fold + permutation is actually exercised.
    gamma = 1.0 + 0.1 * jax.random.normal(k3, (D,), dtype=jnp.float32)
    beta = 0.1 * jax.random.normal(k4, (D,), dtype=jnp.float32)
    weight = (jax.random.normal(k2, (D, out_channels), dtype=jnp.float32)
              / jnp.sqrt(D))

    def reference(x, input_size):
        b, l, c = x.shape
        h, w = input_size
        xh = x.reshape(b, h, w, c)
        ph, pw = (-h) % 2, (-w) % 2
        if ph or pw:
            xh = jnp.pad(xh, ((0, 0), (0, ph), (0, pw), (0, 0)))
        oh, ow = (h + ph) // 2, (w + pw) // 2
        p = xh.reshape(b, oh, 2, ow, 2, c).transpose(0, 1, 3, 5, 2, 4)
        rows = p.reshape(b, oh * ow, 4 * c)          # nn.Unfold feature order
        mean = rows.mean(-1, keepdims=True)
        var = ((rows - mean) ** 2).mean(-1, keepdims=True)
        y = (rows - mean) / jnp.sqrt(var + 1e-5) * gamma + beta
        return y @ weight, (oh, ow)

    # Case 1: even spatial dims (no adaptive padding).
    x1 = jax.random.normal(k1, (B, H * W, C), dtype=jnp.float32)
    y1, sz1 = patch_merging_forward(x1, (H, W), gamma, beta, weight)
    y1 = jax.block_until_ready(y1)
    r1, rsz1 = reference(x1, (H, W))
    assert y1.shape == (B, (H // 2) * (W // 2), out_channels)
    assert sz1 == rsz1 == (H // 2, W // 2)
    # bf16 MXU path (f32 accumulate) vs full-f32 reference -> loose-ish tol.
    assert jnp.allclose(y1, r1, atol=3e-2, rtol=3e-2), \
        float(jnp.max(jnp.abs(y1 - r1)))

    # Case 2: odd height -> exercises the AdaptivePadding 'corner' branch.
    H2, W2 = 15, 16
    x2 = jax.random.normal(k5, (B, H2 * W2, C), dtype=jnp.float32)
    y2, sz2 = patch_merging_forward(x2, (H2, W2), gamma, beta, weight)
    y2 = jax.block_until_ready(y2)
    r2, rsz2 = reference(x2, (H2, W2))
    assert y2.shape == (B, 8 * 8, out_channels)
    assert sz2 == rsz2 == (8, 8)
    assert jnp.allclose(y2, r2, atol=3e-2, rtol=3e-2), \
        float(jnp.max(jnp.abs(y2 - r2)))

    print("KERNEL_OK")
</pallas_src>

<mosaic_0001>
module attributes {stable_mosaic.version = 11 : i64} {
  func.func @_patch_merge_kernel(%arg0: i32, %arg1: memref<4x16x8xf32, #tpu.memory_space<vmem>>, %arg2: memref<2x8x8xbf16, #tpu.memory_space<vmem>>, %arg3: memref<1x8xf32, #tpu.memory_space<vmem>>, %arg4: memref<32x8xf32, #tpu.memory_space<vmem>>) attributes {dimension_semantics = [#tpu.dimension_semantics<parallel>], iteration_bounds = array<i64: 4>, scalar_prefetch = 0 : i64, scratch_operands = 0 : i64, tpu.core_type = #tpu.core_type<tc>, window_params = [{transform_indices = @transform_0, window_bounds = array<i64: 4, 16, 8>}, {pipeline_mode = #tpu.pipeline_mode<synchronous>, transform_indices = @transform_1, window_bounds = array<i64: 2, 8, 8>}, {pipeline_mode = #tpu.pipeline_mode<synchronous>, transform_indices = @transform_2, window_bounds = array<i64: 1, 8>}, {transform_indices = @transform_3, window_bounds = array<i64: 32, 8>}]} {
    %c0 = arith.constant 0 : index
    %c0_0 = arith.constant 0 : index
    %c0_1 = arith.constant 0 : index
    %0 = vector.load %arg1[%c0, %c0_0, %c0_1] : memref<4x16x8xf32, #tpu.memory_space<vmem>>, vector<4x8x8xf32>
    %1 = vector.shape_cast %0 : vector<4x8x8xf32> to vector<32x8xf32>
    %c0_2 = arith.constant 0 : index
    %c8 = arith.constant 8 : index
    %c0_3 = arith.constant 0 : index
    %2 = vector.load %arg1[%c0_2, %c8, %c0_3] : memref<4x16x8xf32, #tpu.memory_space<vmem>>, vector<4x8x8xf32>
    %3 = vector.shape_cast %2 : vector<4x8x8xf32> to vector<32x8xf32>
    %cst = arith.constant dense<0.000000e+00> : vector<32xf32>
    %4 = vector.multi_reduction <add>, %1, %cst [1] : vector<32x8xf32> to vector<32xf32>
    %5 = vector.shape_cast %4 : vector<32xf32> to vector<32x1xf32>
    %cst_4 = arith.constant dense<0.000000e+00> : vector<32xf32>
    %6 = vector.multi_reduction <add>, %3, %cst_4 [1] : vector<32x8xf32> to vector<32xf32>
    %7 = vector.shape_cast %6 : vector<32xf32> to vector<32x1xf32>
    %8 = arith.addf %5, %7 : vector<32x1xf32>
    %9 = arith.mulf %1, %1 : vector<32x8xf32>
    %cst_5 = arith.constant dense<0.000000e+00> : vector<32xf32>
    %10 = vector.multi_reduction <add>, %9, %cst_5 [1] : vector<32x8xf32> to vector<32xf32>
    %11 = vector.shape_cast %10 : vector<32xf32> to vector<32x1xf32>
    %12 = arith.mulf %3, %3 : vector<32x8xf32>
    %cst_6 = arith.constant dense<0.000000e+00> : vector<32xf32>
    %13 = vector.multi_reduction <add>, %12, %cst_6 [1] : vector<32x8xf32> to vector<32xf32>
    %14 = vector.shape_cast %13 : vector<32xf32> to vector<32x1xf32>
    %15 = arith.addf %11, %14 : vector<32x1xf32>
    %cst_7 = arith.constant 6.250000e-02 : f32
    %16 = vector.broadcast %cst_7 : f32 to vector<32x1xf32>
    %17 = arith.mulf %8, %16 : vector<32x1xf32>
    %cst_8 = arith.constant 6.250000e-02 : f32
    %18 = vector.broadcast %cst_8 : f32 to vector<32x1xf32>
    %19 = arith.mulf %15, %18 : vector<32x1xf32>
    %20 = arith.mulf %17, %17 : vector<32x1xf32>
    %21 = arith.subf %19, %20 : vector<32x1xf32>
    %cst_9 = arith.constant 0.000000e+00 : f32
    %22 = vector.broadcast %cst_9 : f32 to vector<32x1xf32>
    %23 = arith.maximumf %21, %22 : vector<32x1xf32>
    %cst_10 = arith.constant 9.99999974E-6 : f32
    %24 = vector.broadcast %cst_10 : f32 to vector<32x1xf32>
    %25 = arith.addf %23, %24 : vector<32x1xf32>
    %26 = math.rsqrt %25 : vector<32x1xf32>
    %27 = vector.broadcast %17 : vector<32x1xf32> to vector<32x8xf32>
    %28 = arith.subf %1, %27 : vector<32x8xf32>
    %29 = vector.broadcast %26 : vector<32x1xf32> to vector<32x8xf32>
    %30 = arith.mulf %28, %29 : vector<32x8xf32>
    %31 = arith.truncf %30 : vector<32x8xf32> to vector<32x8xbf16>
    %32 = vector.broadcast %17 : vector<32x1xf32> to vector<32x8xf32>
    %33 = arith.subf %3, %32 : vector<32x8xf32>
    %34 = vector.broadcast %26 : vector<32x1xf32> to vector<32x8xf32>
    %35 = arith.mulf %33, %34 : vector<32x8xf32>
    %36 = arith.truncf %35 : vector<32x8xf32> to vector<32x8xbf16>
    %c0_11 = arith.constant 0 : index
    %c0_12 = arith.constant 0 : index
    %c0_13 = arith.constant 0 : index
    %37 = vector.load %arg2[%c0_11, %c0_12, %c0_13] : memref<2x8x8xbf16, #tpu.memory_space<vmem>>, vector<1x8x8xbf16>
    %38 = vector.shape_cast %37 : vector<1x8x8xbf16> to vector<8x8xbf16>
    %cst_14 = arith.constant dense<0.000000e+00> : vector<32x8xf32>
    %39 = tpu.matmul %31, %38, %cst_14 {dimension_numbers = #tpu.dot_dimension_numbers<[1], [0], [0], [1], [0, 0, 1, 1], [], []>} : vector<32x8xbf16>, vector<8x8xbf16>, vector<32x8xf32> -> vector<32x8xf32>
    %c1 = arith.constant 1 : index
    %c0_15 = arith.constant 0 : index
    %c0_16 = arith.constant 0 : index
    %40 = vector.load %arg2[%c1, %c0_15, %c0_16] : memref<2x8x8xbf16, #tpu.memory_space<vmem>>, vector<1x8x8xbf16>
    %41 = vector.shape_cast %40 : vector<1x8x8xbf16> to vector<8x8xbf16>
    %cst_17 = arith.constant dense<0.000000e+00> : vector<32x8xf32>
    %42 = tpu.matmul %36, %41, %cst_17 {dimension_numbers = #tpu.dot_dimension_numbers<[1], [0], [0], [1], [0, 0, 1, 1], [], []>} : vector<32x8xbf16>, vector<8x8xbf16>, vector<32x8xf32> -> vector<32x8xf32>
    %43 = arith.addf %39, %42 : vector<32x8xf32>
    %c0_18 = arith.constant 0 : index
    %c0_19 = arith.constant 0 : index
    %44 = vector.load %arg3[%c0_18, %c0_19] : memref<1x8xf32, #tpu.memory_space<vmem>>, vector<1x8xf32>
    %45 = vector.broadcast %44 : vector<1x8xf32> to vector<32x8xf32>
    %46 = arith.addf %43, %45 : vector<32x8xf32>
    %c0_20 = arith.constant 0 : index
    %c0_21 = arith.constant 0 : index
    %47 = vector.load %arg4[%c0_20, %c0_21] : memref<32x8xf32, #tpu.memory_space<vmem>>, vector<32x8xf32>
    tpu.vector_store %arg4[%c0_20, %c0_21], %46 {strides = array<i32>} : memref<32x8xf32, #tpu.memory_space<vmem>>, vector<32x8xf32>,
    return
  }
  func.func @transform_0(%arg0: i32) -> (i32, i32, i32) {
    %c0_i32 = arith.constant 0 : i32
    %c0_i32_0 = arith.constant 0 : i32
    %c0_i32_1 = arith.constant 0 : i32
    return %arg0, %c0_i32, %c0_i32_0 : i32, i32, i32
  }
  func.func @transform_1(%arg0: i32) -> (i32, i32, i32) {
    %c0_i32 = arith.constant 0 : i32
    %c0_i32_0 = arith.constant 0 : i32
    %c0_i32_1 = arith.constant 0 : i32
    %c0_i32_2 = arith.constant 0 : i32
    return %c0_i32, %c0_i32_0, %c0_i32_1 : i32, i32, i32
  }
  func.func @transform_2(%arg0: i32) -> (i32, i32) {
    %c0_i32 = arith.constant 0 : i32
    %c0_i32_0 = arith.constant 0 : i32
    %c0_i32_1 = arith.constant 0 : i32
    return %c0_i32, %c0_i32_0 : i32, i32
  }
  func.func @transform_3(%arg0: i32) -> (i32, i32) {
    %c0_i32 = arith.constant 0 : i32
    %c0_i32_0 = arith.constant 0 : i32
    return %arg0, %c0_i32 : i32, i32
  }
}

</mosaic_0001>

<llo_original>
// kernel: tpu_custom_call.1
$region0: #{tpu_custom_call.1}
  #allocation0 [shape = 'u32[]', space=smem, size = 0x4, offset = 0x4, fixed_abs, tag = 'smem constant byte address 0x4 - core index']
  #allocation1 [shape = 'u32[72,128]{1,0:T(1,128)}', space=vmem, size = 0x9000, scoped, tag = 'internal scratch']
  %s0 = inlined_call_operand.vmem [shape: f32[16,16,8], index: 0, kind: input, shape index: {}]
  %s1 = inlined_call_operand.vmem [shape: bf16[2,8,8], index: 1, kind: input, shape index: {}]
  %s2 = inlined_call_operand.vmem [shape: f32[1,8], index: 2, kind: input, shape index: {}]
  %s3 = inlined_call_operand.vmem [shape: f32[128,8], index: 3, kind: output, shape index: {}]
  %s4 = sld [smem:[#allocation0]]
  $region45: #{tpu_custom_call.1} parent=0
    _
  %s6 = ssub.s32 1, %s4
  %s7 = scalar_select 0, %s6, %s4
  loop: start=0, step=1, limit=6
  $region2: #{tpu_custom_call.1} parent=0 // loop_pre_header
    _
  $region3: #{tpu_custom_call.1} parent=0 // loop_header
    %s9 = sphi 0, %s13
    %p10 = scmp.ge.s32.totalorder %s9, 6
    %s19 = sphi 0, %s21
    %s22 = sphi 0, %s19
    %s23 = sphi 0, %s22
    %s39 = sphi 0, %s23
    %s43 = sphi 0, %s43
    %s45 = sphi 0, %s43
    %s46 = sphi 0, %s45
    %s60 = sphi 0, %s46
    %s64 = sphi 0, %s64
    %s66 = sphi 0, %s64
    %s67 = sphi 0, %s66
    %s81 = sphi 0, %s67
    %s87 = sphi 0, %s89
    %s90 = sphi 0, %s87
    %s91 = sphi 0, %s90
    %s107 = sphi 0, %s91
  $region4: #{tpu_custom_call.1} parent=0 // loop_header_branch
    %12 = sbr.rel (%p10) target = $region8
  $region5: #{tpu_custom_call.1} parent=0 // loop_body
    %s14 = ssub.s32 %s9, 1
    %s15 = ssub.s32 %s9, 2
    %s16 = sadd.s32 %s9, 1
    %s17 = ssub.s32 %s9, %s16
    %p18 = scmp.eq.s32.totalorder %s17, 0
    %s20 = sadd.s32 %s19, 1
    %s21 = scalar_select %p18, %s19, %s20
    %p24 = pneg %p18
    %p25 = scmp.eq.s32.totalorder %s9, 3
    %p26 = por %p24, %p25
    %p27 = scmp.ne.s32.totalorder %s19, %s22
    %p28 = scmp.eq.s32.totalorder %s9, 0
    %p29 = por %p27, %p28
    %p30 = scmp.ne.s32.totalorder %s19, %s22
    %p31 = scmp.eq.s32.totalorder %s14, 3
    %p32 = por %p30, %p31
    %p33 = scmp.ne.s32.totalorder %s22, %s23
    %p34 = scmp.eq.s32.totalorder %s14, 0
    %p35 = por %p33, %p34
    %p36 = scmp.ne.s32.totalorder %s22, %s23
    %p37 = scmp.eq.s32.totalorder %s15, 3
    %p38 = por %p36, %p37
    %p40 = scmp.ne.s32.totalorder %s23, %s39
    %p41 = scmp.eq.s32.totalorder %s15, 0
    %p42 = por %p40, %p41
    %s44 = sadd.s32 %s43, 1
    %p47 = scmp.eq.s32.totalorder %s9, 3
    %p48 = scmp.ne.s32.totalorder %s43, %s45
    %p49 = scmp.eq.s32.totalorder %s9, 0
    %p50 = por %p48, %p49
    %p51 = scmp.ne.s32.totalorder %s43, %s45
    %p52 = scmp.eq.s32.totalorder %s14, 3
    %p53 = por %p51, %p52
    %p54 = scmp.ne.s32.totalorder %s45, %s46
    %p55 = scmp.eq.s32.totalorder %s14, 0
    %p56 = por %p54, %p55
    %p57 = scmp.ne.s32.totalorder %s45, %s46
    %p58 = scmp.eq.s32.totalorder %s15, 3
    %p59 = por %p57, %p58
    %p61 = scmp.ne.s32.totalorder %s46, %s60
    %p62 = scmp.eq.s32.totalorder %s15, 0
    %p63 = por %p61, %p62
    %s65 = sadd.s32 %s64, 1
    %p68 = scmp.eq.s32.totalorder %s9, 3
    %p69 = scmp.ne.s32.totalorder %s64, %s66
    %p70 = scmp.eq.s32.totalorder %s9, 0
    %p71 = por %p69, %p70
    %p72 = scmp.ne.s32.totalorder %s64, %s66
    %p73 = scmp.eq.s32.totalorder %s14, 3
    %p74 = por %p72, %p73
    %p75 = scmp.ne.s32.totalorder %s66, %s67
    %p76 = scmp.eq.s32.totalorder %s14, 0
    %p77 = por %p75, %p76
    %p78 = scmp.ne.s32.totalorder %s66, %s67
    %p79 = scmp.eq.s32.totalorder %s15, 3
    %p80 = por %p78, %p79
    %p82 = scmp.ne.s32.totalorder %s67, %s81
    %p83 = scmp.eq.s32.totalorder %s15, 0
    %p84 = por %p82, %p83
    %s85 = ssub.s32 %s9, %s16
    %p86 = scmp.eq.s32.totalorder %s85, 0
    %s88 = sadd.s32 %s87, 1
    %s89 = scalar_select %p86, %s87, %s88
    %p92 = pneg %p86
    %p93 = scmp.eq.s32.totalorder %s9, 3
    %p94 = por %p92, %p93
    %p95 = scmp.ne.s32.totalorder %s87, %s90
    %p96 = scmp.eq.s32.totalorder %s9, 0
    %p97 = por %p95, %p96
    %p98 = scmp.ne.s32.totalorder %s87, %s90
    %p99 = scmp.eq.s32.totalorder %s14, 3
    %p100 = por %p98, %p99
    %p101 = scmp.ne.s32.totalorder %s90, %s91
    %p102 = scmp.eq.s32.totalorder %s14, 0
    %p103 = por %p101, %p102
    %p104 = scmp.ne.s32.totalorder %s90, %s91
    %p105 = scmp.eq.s32.totalorder %s15, 3
    %p106 = por %p104, %p105
    %p108 = scmp.ne.s32.totalorder %s91, %s107
    %p109 = scmp.eq.s32.totalorder %s15, 0
    %p110 = por %p108, %p109
    %p111 = scmp.le.s32.totalorder 1, %s9
    %p112 = scmp.lt.s32.totalorder %s9, 5
    %p113 = pnand %p111, %p112
    %p114 = pneg %p113
    // Predicated region
    $region9: #{tpu_custom_call.1} parent=5 // pred_check
      _
    $region10: #{tpu_custom_call.1} parent=5 // pred_check_branch
      %116 = sbr.rel (%p113) target = $region12
    $region11: #{tpu_custom_call.1} parent=5 // pred_region
      %s117 = ssub.s32 %s9, 1
      // Predicated region
      $region13: #{tpu_custom_call.1} parent=11 // pred_check
        %p118 = pneg %p56
      $region14: #{tpu_custom_call.1} parent=11 // pred_check_branch
        %120 = sbr.rel (%p118) target = $region16
      $region15: #{tpu_custom_call.1} parent=11 // pred_region
        _
      $region16: #{tpu_custom_call.1} parent=11 // pred_fallthru
        _
      // Predicated region
      $region17: #{tpu_custom_call.1} parent=11 // pred_check
        %p121 = pneg %p77
      $region18: #{tpu_custom_call.1} parent=11 // pred_check_branch
        %123 = sbr.rel (%p121) target = $region20
      $region19: #{tpu_custom_call.1} parent=11 // pred_region
        _
      $region20: #{tpu_custom_call.1} parent=11 // pred_fallthru
        _
    $region12: #{tpu_custom_call.1} parent=5 // pred_fallthru
      _
    %p124 = scmp.lt.s32.totalorder %s9, 4
    // Predicated region
    $region21: #{tpu_custom_call.1} parent=5 // pred_check
      %p125 = pneg %p124
    $region22: #{tpu_custom_call.1} parent=5 // pred_check_branch
      %127 = sbr.rel (%p125) target = $region24
    $region23: #{tpu_custom_call.1} parent=5 // pred_region
      // Predicated region
      $region25: #{tpu_custom_call.1} parent=23 // pred_check
        %p128 = pneg %p29
      $region26: #{tpu_custom_call.1} parent=23 // pred_check_branch
        %130 = sbr.rel (%p128) target = $region28
      $region27: #{tpu_custom_call.1} parent=23 // pred_region
        %s131 = smul.u32 4, %s9
        %p132 = scmp.lt.s32.totalorder %s131, 15
        %s133 = scalar_select %p132, %s131, 15
        %s134 = smul.addr %s133, 2
        %s135 = smul.addr %s134, 8
        %s136 = scalar_lea.vmem %s0, %s135
        %s137 = smul.u32 4, %s9
      $region28: #{tpu_custom_call.1} parent=23 // pred_fallthru
        _
    $region24: #{tpu_custom_call.1} parent=5 // pred_fallthru
      _
    %p138 = scmp.le.s32.totalorder 1, %s9
    %p139 = scmp.lt.s32.totalorder %s9, 5
    %p140 = pnand %p138, %p139
    %p141 = pneg %p140
    // Predicated region
    $region29: #{tpu_custom_call.1} parent=5 // pred_check
      _
    $region30: #{tpu_custom_call.1} parent=5 // pred_check_branch
      %143 = sbr.rel (%p140) target = $region32
    $region31: #{tpu_custom_call.1} parent=5 // pred_region
      %s144 = ssub.s32 %s9, 1
      %s145 = smul.u32 4, %s14
      %p146 = scmp.lt.s32.totalorder %s145, 15
      %s147 = scalar_select %p146, %s145, 15
      %s148 = smul.addr %s147, 2
      %s149 = smul.addr %s148, 8
      %s150 = scalar_lea.vmem %s0, %s149
      %p151 = pneg %p35
      %p152 = pneg %p32
      %p153 = pneg %p56
      %p154 = pneg %p53
      %p155 = pneg %p77
      %p156 = pneg %p74
      %p157 = pneg %p103
      %p158 = pneg %p100
      %s159 = smul.u32 4, %s14
      %p160 = scmp.lt.s32.totalorder %s159, 15
      %s161 = scalar_select %p160, %s159, 15
      %s162 = smul.addr %s161, 8
      %s163 = scalar_lea.vmem %s3, %s162
      %s164 = smul.u32 4, %s14
      %p165 = scmp.lt.s32.totalorder %s164, 15
      %s166 = scalar_select %p165, %s164, 15
      %s167 = smul.addr %s166, 2
      %s168 = smul.addr %s167, 8
      %s169 = scalar_lea.vmem %s0, %s168
      %s170 = smul.u32 4, %s14
      %s171 = smul.u32 4, %s14
      %p172 = scmp.lt.s32.totalorder %s171, 15
      %s173 = scalar_select %p172, %s171, 15
      %s174 = smul.addr %s173, 8
      %s175 = scalar_lea.vmem %s3, %s174
      %s176 = smul.u32 4, %s14
      %v178 = vld [vmem:[%s169] sm:$0xff]
      %v179 = vld [vmem:[%s169 + $0x10] sm:$0xff]
      %v180 = vld [vmem:[%s169 + $0x20] sm:$0xff]
      %v181 = vld [vmem:[%s169 + $0x30] sm:$0xff]
      %v182 = vld [vmem:[%s169 + $0x8] sm:$0xff]
      %v183 = vld [vmem:[%s169 + $0x18] sm:$0xff]
      %v184 = vld [vmem:[%s169 + $0x28] sm:$0xff]
      %v185 = vld [vmem:[%s169 + $0x38] sm:$0xff]
      %vm186 = vcmask 64512
      %v187 = vsel %vm186, %v178, 0.0
      %188 = vadd.xlane.f32.xlu0 %v187
      %v189 = vpop.xlane.xlu0 %188
      %v190 = vsel %vm186, %v179, 0.0
      %191 = vadd.xlane.f32.xlu0 %v190
      %v192 = vpop.xlane.xlu0 %191
      %v193 = vsel %vm186, %v180, 0.0
      %194 = vadd.xlane.f32.xlu0 %v193
      %v195 = vpop.xlane.xlu0 %194
      %v196 = vsel %vm186, %v181, 0.0
      %197 = vadd.xlane.f32.xlu0 %v196
      %v198 = vpop.xlane.xlu0 %197
      %v199 = vsel %vm186, %v182, 0.0
      %200 = vadd.xlane.f32.xlu0 %v199
      %v201 = vpop.xlane.xlu0 %200
      %v202 = vsel %vm186, %v183, 0.0
      %203 = vadd.xlane.f32.xlu0 %v202
      %v204 = vpop.xlane.xlu0 %203
      %v205 = vsel %vm186, %v184, 0.0
      %206 = vadd.xlane.f32.xlu0 %v205
      %v207 = vpop.xlane.xlu0 %206
      %v208 = vsel %vm186, %v185, 0.0
      %209 = vadd.xlane.f32.xlu0 %v208
      %v210 = vpop.xlane.xlu0 %209
      %v211 = vadd.f32 %v189, %v201
      %v212 = vadd.f32 %v192, %v204
      %v213 = vadd.f32 %v195, %v207
      %v214 = vadd.f32 %v198, %v210
      %v215 = vmul.f32 %v178, %v178
      %v216 = vmul.f32 %v179, %v179
      %v217 = vmul.f32 %v180, %v180
      %v218 = vmul.f32 %v181, %v181
      %v219 = vsel %vm186, %v215, 0.0
      %220 = vadd.xlane.f32.xlu0 %v219
      %v221 = vpop.xlane.xlu0 %220
      %v222 = vsel %vm186, %v216, 0.0
      %223 = vadd.xlane.f32.xlu0 %v222
      %v224 = vpop.xlane.xlu0 %223
      %v225 = vsel %vm186, %v217, 0.0
      %226 = vadd.xlane.f32.xlu0 %v225
      %v227 = vpop.xlane.xlu0 %226
      %v228 = vsel %vm186, %v218, 0.0
      %229 = vadd.xlane.f32.xlu0 %v228
      %v230 = vpop.xlane.xlu0 %229
      %v231 = vmul.f32 %v182, %v182
      %v232 = vmul.f32 %v183, %v183
      %v233 = vmul.f32 %v184, %v184
      %v234 = vmul.f32 %v185, %v185
      %v235 = vsel %vm186, %v231, 0.0
      %236 = vadd.xlane.f32.xlu0 %v235
      %v237 = vpop.xlane.xlu0 %236
      %v238 = vsel %vm186, %v232, 0.0
      %239 = vadd.xlane.f32.xlu0 %v238
      %v240 = vpop.xlane.xlu0 %239
      %v241 = vsel %vm186, %v233, 0.0
      %242 = vadd.xlane.f32.xlu0 %v241
      %v243 = vpop.xlane.xlu0 %242
      %v244 = vsel %vm186, %v234, 0.0
      %245 = vadd.xlane.f32.xlu0 %v244
      %v246 = vpop.xlane.xlu0 %245
      %v247 = vadd.f32 %v221, %v237
      %v248 = vadd.f32 %v224, %v240
      %v249 = vadd.f32 %v227, %v243
      %v250 = vadd.f32 %v230, %v246
      %v251 = vmul.f32 %v211, 0.0625
      %v252 = vmul.f32 %v212, 0.0625
      %v253 = vmul.f32 %v213, 0.0625
      %v254 = vmul.f32 %v214, 0.0625
      %v255 = vmul.f32 %v247, 0.0625
      %v256 = vmul.f32 %v248, 0.0625
      %v257 = vmul.f32 %v249, 0.0625
      %v258 = vmul.f32 %v250, 0.0625
      %v259 = vmul.f32 %v251, %v251
      %v260 = vmul.f32 %v252, %v252
      %v261 = vmul.f32 %v253, %v253
      %v262 = vmul.f32 %v254, %v254
      %v263 = vsub.f32 %v255, %v259
      %v264 = vsub.f32 %v256, %v260
      %v265 = vsub.f32 %v257, %v261
      %v266 = vsub.f32 %v258, %v262
      %v267 = vmax.f32 %v263, 0.0
      %v268 = vmax.f32 %v264, 0.0
      %v269 = vmax.f32 %v265, 0.0
      %v270 = vmax.f32 %v266, 0.0
      %v271 = vadd.f32 %v267, 1e-05
      %v272 = vadd.f32 %v268, 1e-05
      %v273 = vadd.f32 %v269, 1e-05
      %v274 = vadd.f32 %v270, 1e-05
      %v275 = vrsqrt.pop %v271
      %v276 = vmul.f32 %v275, %v271
      %v277 = vmul.f32 %v276, %v275
      %v278 = vmul.f32 0.5, %v277
      %v279 = vsub.f32 1.5, %v278
      %v280 = vmul.f32 %v275, %v279
      %vm281 = vweird.f32 %v271
      %vm282 = vweird.f32 %v275
      %vm283 = vmor %vm281, %vm282
      %v284 = vsel %vm283, %v275, %v280
      %v285 = vrsqrt.pop %v272
      %v286 = vmul.f32 %v285, %v272
      %v287 = vmul.f32 %v286, %v285
      %v288 = vmul.f32 0.5, %v287
      %v289 = vsub.f32 1.5, %v288
      %v290 = vmul.f32 %v285, %v289
      %vm291 = vweird.f32 %v272
      %vm292 = vweird.f32 %v285
      %vm293 = vmor %vm291, %vm292
      %v294 = vsel %vm293, %v285, %v290
      %v295 = vrsqrt.pop %v273
      %v296 = vmul.f32 %v295, %v273
      %v297 = vmul.f32 %v296, %v295
      %v298 = vmul.f32 0.5, %v297
      %v299 = vsub.f32 1.5, %v298
      %v300 = vmul.f32 %v295, %v299
      %vm301 = vweird.f32 %v273
      %vm302 = vweird.f32 %v295
      %vm303 = vmor %vm301, %vm302
      %v304 = vsel %vm303, %v295, %v300
      %v305 = vrsqrt.pop %v274
      %v306 = vmul.f32 %v305, %v274
      %v307 = vmul.f32 %v306, %v305
      %v308 = vmul.f32 0.5, %v307
      %v309 = vsub.f32 1.5, %v308
      %v310 = vmul.f32 %v305, %v309
      %vm311 = vweird.f32 %v274
      %vm312 = vweird.f32 %v305
      %vm313 = vmor %vm311, %vm312
      %v314 = vsel %vm313, %v305, %v310
      %v315 = vsub.f32 %v178, %v251
      %v316 = vsub.f32 %v179, %v252
      %v317 = vsub.f32 %v180, %v253
      %v318 = vsub.f32 %v181, %v254
      %v319 = vmul.f32 %v315, %v284
      %v320 = vmul.f32 %v316, %v294
      %v321 = vmul.f32 %v317, %v304
      %v322 = vmul.f32 %v318, %v314
      %v323 = vpack.c.bf16 %v320, %v319
      %v324 = vpack.c.bf16 %v322, %v321
      %v325 = vsub.f32 %v182, %v251
      %v326 = vsub.f32 %v183, %v252
      %v327 = vsub.f32 %v184, %v253
      %v328 = vsub.f32 %v185, %v254
      %v329 = vmul.f32 %v325, %v284
      %v330 = vmul.f32 %v326, %v294
      %v331 = vmul.f32 %v327, %v304
      %v332 = vmul.f32 %v328, %v314
      %v333 = vpack.c.bf16 %v330, %v329
      %v334 = vpack.c.bf16 %v332, %v331
      %v335 = vld [vmem:[%s1] sm:$0xf]
      %s336 = scalar_lea.vmem %s1, 4
      %v337 = vld [vmem:[%s336] sm:$0xf]
      %v339 = vsel %vm186, %v333, 0
      %v342 = vsel %vm186, %v334, 0
      %vm344 = vcmask 1043456
      %v346 = vsel %vm344, %v337, 0
      %348 = vmatpush.bf16.msra.mxu0 0
      %349 = vmatpush.bf16.msra.mxu0 0
      %350 = vmatpush.bf16.msra.mxu0 0
      %351 = vmatpush.bf16.msra.mxu0 0
      %352 = vmatpush.bf16.msra.mxu0 0
      %353 = vmatpush.bf16.msra.mxu0 0
      %354 = vmatpush.bf16.msra.mxu0 0
      %355 = vmatpush.bf16.msra.mxu0 %v346
      %356 = vmatmul.bf16.gmra.mxu0 %v339
      %v357 = vpop.f32.mrf.mxu0
      %v358 = vadd.f32 0.0, %v357
      %v359 = vpop.f32.mrf.mxu0
      %v360 = vadd.f32 0.0, %v359
      %361 = vmatmul.bf16.gmra.mxu0 %v342
      %v362 = vpop.f32.mrf.mxu0
      %v363 = vadd.f32 0.0, %v362
      %v364 = vpop.f32.mrf.mxu0
      %v365 = vadd.f32 0.0, %v364
      %366 = vdwg.mxu0
      %v368 = vsel %vm186, %v323, 0
      %v371 = vsel %vm186, %v324, 0
      %v374 = vsel %vm344, %v335, 0
      %376 = vmatpush.bf16.msra.mxu0 0
      %377 = vmatpush.bf16.msra.mxu0 0
      %378 = vmatpush.bf16.msra.mxu0 0
      %379 = vmatpush.bf16.msra.mxu0 0
      %380 = vmatpush.bf16.msra.mxu0 0
      %381 = vmatpush.bf16.msra.mxu0 0
      %382 = vmatpush.bf16.msra.mxu0 0
      %383 = vmatpush.bf16.msra.mxu0 %v374
      %384 = vmatmul.bf16.gmra.mxu0 %v368
      %v385 = vpop.f32.mrf.mxu0
      %v386 = vadd.f32 %v358, %v385
      %v387 = vpop.f32.mrf.mxu0
      %v388 = vadd.f32 %v360, %v387
      %389 = vmatmul.bf16.gmra.mxu0 %v371
      %v390 = vpop.f32.mrf.mxu0
      %v391 = vadd.f32 %v363, %v390
      %v392 = vpop.f32.mrf.mxu0
      %v393 = vadd.f32 %v365, %v392
      %394 = vdwg.mxu0
      %v395 = vld [vmem:[%s2] sm:$0x1]
      %v397 = vperm.slane %v395, 0
      %v399 = vadd.f32 %v386, %v397
      %v400 = vadd.f32 %v388, %v397
      %v401 = vadd.f32 %v391, %v397
      %v402 = vadd.f32 %v393, %v397
      %403 = vst.msk [vmem:[%s175] sm:$0xff] %vm186, %v399
      %404 = vst.msk [vmem:[%s175 + $0x8] sm:$0xff] %vm186, %v400
      %405 = vst.msk [vmem:[%s175 + $0x10] sm:$0xff] %vm186, %v401
      %406 = vst.msk [vmem:[%s175 + $0x18] sm:$0xff] %vm186, %v402
      %s407 = smul.u32 4, %s14
      %p408 = scmp.lt.s32.totalorder %s407, 15
      %s409 = scalar_select %p408, %s407, 15
      %s410 = smul.addr %s409, 8
      %s411 = scalar_lea.vmem %s3, %s410
      // Predicated region
      $region33: #{tpu_custom_call.1} parent=31 // pred_check
        %p412 = pneg %p100
      $region34: #{tpu_custom_call.1} parent=31 // pred_check_branch
        %414 = sbr.rel (%p412) target = $region36
      $region35: #{tpu_custom_call.1} parent=31 // pred_region
        %s415 = smul.u32 4, %s14
      $region36: #{tpu_custom_call.1} parent=31 // pred_fallthru
        _
    $region32: #{tpu_custom_call.1} parent=5 // pred_fallthru
      _
    %p416 = scmp.le.s32.totalorder 2, %s9
    // Predicated region
    $region37: #{tpu_custom_call.1} parent=5 // pred_check
      %p417 = pneg %p416
    $region38: #{tpu_custom_call.1} parent=5 // pred_check_branch
      %419 = sbr.rel (%p417) target = $region40
    $region39: #{tpu_custom_call.1} parent=5 // pred_region
      %s420 = ssub.s32 %s9, 2
      // Predicated region
      $region41: #{tpu_custom_call.1} parent=39 // pred_check
        %p421 = pneg %p106
      $region42: #{tpu_custom_call.1} parent=39 // pred_check_branch
        %423 = sbr.rel (%p421) target = $region44
      $region43: #{tpu_custom_call.1} parent=39 // pred_region
        %s424 = smul.u32 4, %s15
        %p425 = scmp.lt.s32.totalorder %s424, 15
        %s426 = scalar_select %p425, %s424, 15
        %s427 = smul.addr %s426, 8
        %s428 = scalar_lea.vmem %s3, %s427
      $region44: #{tpu_custom_call.1} parent=39 // pred_fallthru
        _
    $region40: #{tpu_custom_call.1} parent=5 // pred_fallthru
      _
  $region6: #{tpu_custom_call.1} parent=0 // loop_footer
    %s13 = sadd.s32 1, %s9
  $region7: #{tpu_custom_call.1} parent=0 // loop_footer_branch
    %8 = sbr.rel target = $region3
  $region8: #{tpu_custom_call.1} parent=0 // loop_exit
    _

</llo_original>
